<compile_context>
chip_gen: v5e
topology: v5e:2x2
jax: 0.10.0
libtpu: 0.0.40
codegen_flags: <defaults>
</compile_context>

<pallas_src>
import jax
import jax.numpy as jnp
from jax.experimental import pallas as pl
from jax.experimental.pallas import tpu as pltpu

HIDDEN = 256


def _round_up(x: int, m: int) -> int:
    return (x + m - 1) // m * m


def _soft_q_kernel(obs_ref, act_ref, w1_ref, b1_ref, w2_ref, b2_ref,
                   w3_ref, b3_ref, o_ref):
    wdt = w1_ref.dtype                      # compute dtype of the MXU matmuls
    tb = obs_ref.shape[0]
    d = obs_ref.shape[1] + act_ref.shape[1]
    d_pad = w1_ref.shape[0]                 # W1 rows padded to a 16-multiple

    # Fused concat (cheap in-VMEM lane shuffle) + zero-pad to the padded K dim,
    # then ONE layer-1 matmul instead of two tiny-K matmuls.
    parts = [obs_ref[...], act_ref[...]]
    if d_pad > d:
        parts.append(jnp.zeros((tb, d_pad - d), obs_ref.dtype))
    x = jnp.concatenate(parts, axis=-1).astype(wdt)                   # (TB, Dp)

    h1 = jnp.dot(x, w1_ref[...],
                 preferred_element_type=jnp.float32) + b1_ref[...]    # (TB, 256) f32
    h1 = jnp.maximum(h1, 0.0)

    h2 = jnp.dot(h1.astype(wdt), w2_ref[...],
                 preferred_element_type=jnp.float32) + b2_ref[...]    # (TB, 256) f32
    h2 = jnp.maximum(h2, 0.0)

    # Head (256 -> 1): VPU multiply + lane reduction; scalar bias from SMEM.
    out = jnp.sum(h2 * w3_ref[...], axis=-1) + b3_ref[0, 0]           # (TB,) f32
    o_ref[...] = out[None, :].astype(o_ref.dtype)                     # (1, TB) lane-dense


def _choose_tile(batch: int, block_b: int):
    """Pick (tb, b_pad): big tiles, >=2 tiles for large B, lane-dense output."""
    b8 = _round_up(batch, 8)
    if b8 <= 256:
        return b8, b8                       # single tile; (1, tb) == full output dims
    # Multi-tile: tb must be a multiple of 128 (lane-dense (1, tb) output blocks).
    # Cap at ceil(B/2) so the grid has >= 2 "parallel" steps (v7x has 2 TCs).
    tb = max(128, _round_up(block_b, 128))
    tb = min(tb, _round_up(pl.cdiv(batch, 2), 128))
    b_pad = _round_up(batch, tb)
    return tb, b_pad


def soft_q_forward(observation, action, kparams, *, block_b=2048):
    """observation: (B, obs_dim) f32, action: (B, act_dim) f32 -> (B,) f32.

    `kparams` must come from prepare_params() (weights already cast/padded)."""
    B, obs_dim = observation.shape
    _, act_dim = action.shape
    w1, b1, w2, b2, w3, b3 = kparams
    d_pad = w1.shape[0]

    tb, b_pad = _choose_tile(B, block_b)
    if b_pad != B:
        observation = jnp.pad(observation, ((0, b_pad - B), (0, 0)))
        action = jnp.pad(action, ((0, b_pad - B), (0, 0)))
    grid = (b_pad // tb,)

    out = pl.pallas_call(
        _soft_q_kernel,
        out_shape=jax.ShapeDtypeStruct((1, b_pad), jnp.float32),
        grid=grid,
        in_specs=[
            pl.BlockSpec((tb, obs_dim), lambda i: (i, 0)),        # obs tile
            pl.BlockSpec((tb, act_dim), lambda i: (i, 0)),        # act tile
            pl.BlockSpec((d_pad, HIDDEN), lambda i: (0, 0)),      # W1 (padded, resident)
            pl.BlockSpec((1, HIDDEN), lambda i: (0, 0)),          # b1 (resident)
            pl.BlockSpec((HIDDEN, HIDDEN), lambda i: (0, 0)),     # W2 (resident)
            pl.BlockSpec((1, HIDDEN), lambda i: (0, 0)),          # b2 (resident)
            pl.BlockSpec((1, HIDDEN), lambda i: (0, 0)),          # W3 row (resident)
            pl.BlockSpec(memory_space=pltpu.MemorySpace.SMEM),    # b3 scalar (SMEM)
        ],
        out_specs=pl.BlockSpec((1, tb), lambda i: (0, i)),        # lane-dense output
        compiler_params=pltpu.CompilerParams(
            dimension_semantics=("parallel",),   # megacore sharding on v7x
        ),
    )(observation, action, w1, b1, w2, b2, w3, b3)
    return out[0, :B]                            # squeeze(1) + drop padding -- glue


def init_params(key, obs_dim, act_dim):
    """PyTorch-Linear-style init (uniform(-1/sqrt(fan_in), +)), raw f32 params."""
    in_dim = obs_dim + act_dim
    ks = jax.random.split(key, 6)

    def linear(kw, kb, fan_in, fan_out):
        bound = 1.0 / jnp.sqrt(jnp.float32(fan_in))
        w = jax.random.uniform(kw, (fan_in, fan_out), jnp.float32, -bound, bound)
        b = jax.random.uniform(kb, (fan_out,), jnp.float32, -bound, bound)
        return w, b

    w1, b1 = linear(ks[0], ks[1], in_dim, HIDDEN)
    w2, b2 = linear(ks[2], ks[3], HIDDEN, HIDDEN)
    w3, b3 = linear(ks[4], ks[5], HIDDEN, 1)
    return (w1, b1, w2, b2, w3, b3)


def prepare_params(raw_params, compute_dtype=jnp.bfloat16):
    """One-time weight prep (cast + pad + reshape) done OUTSIDE the hot path."""
    w1, b1, w2, b2, w3, b3 = raw_params
    d = w1.shape[0]
    d_pad = _round_up(d, 16)                 # 16-row multiple (clean bf16 packing)
    if d_pad != d:
        w1 = jnp.pad(w1, ((0, d_pad - d), (0, 0)))
    return (w1.astype(compute_dtype),
            b1.reshape(1, HIDDEN).astype(jnp.float32),
            w2.astype(compute_dtype),
            b2.reshape(1, HIDDEN).astype(jnp.float32),
            w3.reshape(1, HIDDEN).astype(jnp.float32),   # head row for the VPU path
            b3.reshape(1, 1).astype(jnp.float32))        # scalar bias -> SMEM


def reference(observation, action, raw_params):
    """Plain-JAX reference matching the PyTorch module."""
    w1, b1, w2, b2, w3, b3 = raw_params
    x = jnp.concatenate([observation, action], axis=1)
    h = jnp.maximum(x @ w1 + b1, 0.0)
    h = jnp.maximum(h @ w2 + b2, 0.0)
    return (h @ w3 + b3)[:, 0]


if __name__ == "__main__":
    key = jax.random.PRNGKey(0)
    k_obs, k_act, k_par = jax.random.split(key, 3)

    batch, obs_dim, act_dim = 8, 16, 8
    observation = jax.random.normal(k_obs, (batch, obs_dim), jnp.float32)
    action = jax.random.normal(k_act, (batch, act_dim), jnp.float32)
    raw = init_params(k_par, obs_dim, act_dim)
    ref = reference(observation, action, raw)

    # 1) Default bf16 compute path (weights cast once, outside the hot path).
    kparams_bf16 = prepare_params(raw)                       # bf16 default
    value = soft_q_forward(observation, action, kparams_bf16)
    jax.block_until_ready(value)
    assert value.shape == (batch,)
    assert jnp.allclose(value, ref, atol=7.5e-2, rtol=5e-2)

    # 2) f32 compute path, single tile -- tight tolerance.
    kparams_f32 = prepare_params(raw, compute_dtype=jnp.float32)
    value_f32 = soft_q_forward(observation, action, kparams_f32)
    jax.block_until_ready(value_f32)
    assert value_f32.shape == (batch,)
    assert jnp.allclose(value_f32, ref, atol=1e-4, rtol=1e-4)

    # 3) Multi-tile grid + batch padding (lane-dense tb=128 blocks), f32.
    batch2 = 300
    ko2, ka2 = jax.random.split(jax.random.PRNGKey(1), 2)
    obs2 = jax.random.normal(ko2, (batch2, obs_dim), jnp.float32)
    act2 = jax.random.normal(ka2, (batch2, act_dim), jnp.float32)
    v2 = soft_q_forward(obs2, act2, kparams_f32, block_b=128)
    jax.block_until_ready(v2)
    r2 = reference(obs2, act2, raw)
    assert v2.shape == (batch2,)
    assert jnp.allclose(v2, r2, atol=1e-4, rtol=1e-4)

    # 4) Larger batch, default tiling -> >= 2 parallel tiles (v7x megacore path), bf16.
    batch3 = 512
    ko3, ka3 = jax.random.split(jax.random.PRNGKey(2), 2)
    obs3 = jax.random.normal(ko3, (batch3, obs_dim), jnp.float32)
    act3 = jax.random.normal(ka3, (batch3, act_dim), jnp.float32)
    v3 = soft_q_forward(obs3, act3, kparams_bf16)
    jax.block_until_ready(v3)
    r3 = reference(obs3, act3, raw)
    assert v3.shape == (batch3,)
    assert jnp.allclose(v3, r3, atol=1e-1, rtol=5e-2)

    print("KERNEL_OK")
</pallas_src>

<mosaic_0001>
module attributes {stable_mosaic.version = 11 : i64} {
  func.func @_soft_q_kernel(%arg0: i32, %arg1: memref<8x16xf32, #tpu.memory_space<vmem>>, %arg2: memref<8x8xf32, #tpu.memory_space<vmem>>, %arg3: memref<32x256xbf16, #tpu.memory_space<vmem>>, %arg4: memref<1x256xf32, #tpu.memory_space<vmem>>, %arg5: memref<256x256xbf16, #tpu.memory_space<vmem>>, %arg6: memref<1x256xf32, #tpu.memory_space<vmem>>, %arg7: memref<1x256xf32, #tpu.memory_space<vmem>>, %arg8: memref<1x1xf32, #tpu.memory_space<smem>>, %arg9: memref<1x8xf32, #tpu.memory_space<vmem>>) attributes {dimension_semantics = [#tpu.dimension_semantics<parallel>], iteration_bounds = array<i64: 1>, scalar_prefetch = 0 : i64, scratch_operands = 0 : i64, tpu.core_type = #tpu.core_type<tc>, window_params = [{transform_indices = @transform_0, window_bounds = array<i64: 8, 16>}, {transform_indices = @transform_1, window_bounds = array<i64: 8, 8>}, {pipeline_mode = #tpu.pipeline_mode<synchronous>, transform_indices = @transform_2, window_bounds = array<i64: 32, 256>}, {pipeline_mode = #tpu.pipeline_mode<synchronous>, transform_indices = @transform_3, window_bounds = array<i64: 1, 256>}, {pipeline_mode = #tpu.pipeline_mode<synchronous>, transform_indices = @transform_4, window_bounds = array<i64: 256, 256>}, {pipeline_mode = #tpu.pipeline_mode<synchronous>, transform_indices = @transform_5, window_bounds = array<i64: 1, 256>}, {pipeline_mode = #tpu.pipeline_mode<synchronous>, transform_indices = @transform_6, window_bounds = array<i64: 1, 256>}, {transform_indices = @transform_7, window_bounds = array<i64: 1, 1>}, {transform_indices = @transform_8, window_bounds = array<i64: 1, 8>}]} {
    %c0 = arith.constant 0 : index
    %c0_0 = arith.constant 0 : index
    %0 = vector.load %arg1[%c0, %c0_0] : memref<8x16xf32, #tpu.memory_space<vmem>>, vector<8x16xf32>
    %c0_1 = arith.constant 0 : index
    %c0_2 = arith.constant 0 : index
    %1 = vector.load %arg2[%c0_1, %c0_2] : memref<8x8xf32, #tpu.memory_space<vmem>>, vector<8x8xf32>
    %cst = arith.constant 0.000000e+00 : f32
    %2 = vector.broadcast %cst : f32 to vector<8x8xf32>
    %3 = tpu.concatenate %0, %1, %2 in 1 : vector<8x16xf32>, vector<8x8xf32>, vector<8x8xf32> -> vector<8x32xf32>
    %4 = arith.truncf %3 : vector<8x32xf32> to vector<8x32xbf16>
    %c0_3 = arith.constant 0 : index
    %c0_4 = arith.constant 0 : index
    %5 = vector.load %arg3[%c0_3, %c0_4] : memref<32x256xbf16, #tpu.memory_space<vmem>>, vector<32x256xbf16>
    %cst_5 = arith.constant dense<0.000000e+00> : vector<8x256xf32>
    %6 = tpu.matmul %4, %5, %cst_5 {dimension_numbers = #tpu.dot_dimension_numbers<[1], [0], [0], [1], [0, 0, 1, 1], [], []>} : vector<8x32xbf16>, vector<32x256xbf16>, vector<8x256xf32> -> vector<8x256xf32>
    %c0_6 = arith.constant 0 : index
    %c0_7 = arith.constant 0 : index
    %7 = vector.load %arg4[%c0_6, %c0_7] : memref<1x256xf32, #tpu.memory_space<vmem>>, vector<1x256xf32>
    %8 = vector.broadcast %7 : vector<1x256xf32> to vector<8x256xf32>
    %9 = arith.addf %6, %8 : vector<8x256xf32>
    %cst_8 = arith.constant 0.000000e+00 : f32
    %10 = vector.broadcast %cst_8 : f32 to vector<8x256xf32>
    %11 = arith.maximumf %9, %10 : vector<8x256xf32>
    %12 = arith.truncf %11 : vector<8x256xf32> to vector<8x256xbf16>
    %c0_9 = arith.constant 0 : index
    %c0_10 = arith.constant 0 : index
    %13 = vector.load %arg5[%c0_9, %c0_10] : memref<256x256xbf16, #tpu.memory_space<vmem>>, vector<256x256xbf16>
    %cst_11 = arith.constant dense<0.000000e+00> : vector<8x256xf32>
    %14 = tpu.matmul %12, %13, %cst_11 {dimension_numbers = #tpu.dot_dimension_numbers<[1], [0], [0], [1], [0, 0, 1, 1], [], []>} : vector<8x256xbf16>, vector<256x256xbf16>, vector<8x256xf32> -> vector<8x256xf32>
    %c0_12 = arith.constant 0 : index
    %c0_13 = arith.constant 0 : index
    %15 = vector.load %arg6[%c0_12, %c0_13] : memref<1x256xf32, #tpu.memory_space<vmem>>, vector<1x256xf32>
    %16 = vector.broadcast %15 : vector<1x256xf32> to vector<8x256xf32>
    %17 = arith.addf %14, %16 : vector<8x256xf32>
    %cst_14 = arith.constant 0.000000e+00 : f32
    %18 = vector.broadcast %cst_14 : f32 to vector<8x256xf32>
    %19 = arith.maximumf %17, %18 : vector<8x256xf32>
    %c0_15 = arith.constant 0 : index
    %c0_16 = arith.constant 0 : index
    %20 = vector.load %arg7[%c0_15, %c0_16] : memref<1x256xf32, #tpu.memory_space<vmem>>, vector<1x256xf32>
    %21 = vector.broadcast %20 : vector<1x256xf32> to vector<8x256xf32>
    %22 = arith.mulf %19, %21 : vector<8x256xf32>
    %cst_17 = arith.constant dense<0.000000e+00> : vector<8xf32>
    %23 = vector.multi_reduction <add>, %22, %cst_17 [1] : vector<8x256xf32> to vector<8xf32>
    %c0_18 = arith.constant 0 : index
    %c0_19 = arith.constant 0 : index
    %24 = memref.load %arg8[%c0_18, %c0_19] : memref<1x1xf32, #tpu.memory_space<smem>>
    %25 = vector.broadcast %24 : f32 to vector<8xf32>
    %26 = arith.addf %23, %25 : vector<8xf32>
    %27 = vector.shape_cast %26 : vector<8xf32> to vector<1x8xf32>
    %c0_20 = arith.constant 0 : index
    %c0_21 = arith.constant 0 : index
    %28 = vector.load %arg9[%c0_20, %c0_21] : memref<1x8xf32, #tpu.memory_space<vmem>>, vector<1x8xf32>
    tpu.vector_store %arg9[%c0_20, %c0_21], %27 {strides = array<i32>} : memref<1x8xf32, #tpu.memory_space<vmem>>, vector<1x8xf32>,
    return
  }
  func.func @transform_0(%arg0: i32) -> (i32, i32) {
    %c0_i32 = arith.constant 0 : i32
    %c0_i32_0 = arith.constant 0 : i32
    return %arg0, %c0_i32 : i32, i32
  }
  func.func @transform_1(%arg0: i32) -> (i32, i32) {
    %c0_i32 = arith.constant 0 : i32
    %c0_i32_0 = arith.constant 0 : i32
    return %arg0, %c0_i32 : i32, i32
  }
  func.func @transform_2(%arg0: i32) -> (i32, i32) {
    %c0_i32 = arith.constant 0 : i32
    %c0_i32_0 = arith.constant 0 : i32
    %c0_i32_1 = arith.constant 0 : i32
    return %c0_i32, %c0_i32_0 : i32, i32
  }
  func.func @transform_3(%arg0: i32) -> (i32, i32) {
    %c0_i32 = arith.constant 0 : i32
    %c0_i32_0 = arith.constant 0 : i32
    %c0_i32_1 = arith.constant 0 : i32
    return %c0_i32, %c0_i32_0 : i32, i32
  }
  func.func @transform_4(%arg0: i32) -> (i32, i32) {
    %c0_i32 = arith.constant 0 : i32
    %c0_i32_0 = arith.constant 0 : i32
    %c0_i32_1 = arith.constant 0 : i32
    return %c0_i32, %c0_i32_0 : i32, i32
  }
  func.func @transform_5(%arg0: i32) -> (i32, i32) {
    %c0_i32 = arith.constant 0 : i32
    %c0_i32_0 = arith.constant 0 : i32
    %c0_i32_1 = arith.constant 0 : i32
    return %c0_i32, %c0_i32_0 : i32, i32
  }
  func.func @transform_6(%arg0: i32) -> (i32, i32) {
    %c0_i32 = arith.constant 0 : i32
    %c0_i32_0 = arith.constant 0 : i32
    %c0_i32_1 = arith.constant 0 : i32
    return %c0_i32, %c0_i32_0 : i32, i32
  }
  func.func @transform_7(%arg0: i32) -> (i32, i32) {
    %c0_i32 = arith.constant 0 : i32
    %c0_i32_0 = arith.constant 0 : i32
    %c0_i32_1 = arith.constant 0 : i32
    return %c0_i32, %c0_i32_0 : i32, i32
  }
  func.func @transform_8(%arg0: i32) -> (i32, i32) {
    %c0_i32 = arith.constant 0 : i32
    %c0_i32_0 = arith.constant 0 : i32
    return %c0_i32, %arg0 : i32, i32
  }
}

</mosaic_0001>

<llo_original>
// kernel: tpu_custom_call.1
$region0: #{tpu_custom_call.1}
  #allocation0 [shape = 'u32[]', space=smem, size = 0x4, offset = 0x4, fixed_abs, tag = 'smem constant byte address 0x4 - core index']
  #allocation1 [shape = 'u32[72,128]{1,0:T(1,128)}', space=vmem, size = 0x9000, scoped, tag = 'internal scratch']
  #allocation2 [shape = 'f32[1,1]{1,0:T(1,128)S(6)}', space=smem, size = 0x200, scoped, tag = 'scoped memory for tpu_custom_call.1']
  %s0 = inlined_call_operand.hbm [shape: f32[8,16], index: 0, kind: input, shape index: {}]
  %s1 = inlined_call_operand.hbm [shape: f32[8,8], index: 1, kind: input, shape index: {}]
  %s2 = inlined_call_operand.hbm [shape: bf16[32,256], index: 2, kind: input, shape index: {}]
  %s3 = inlined_call_operand.vmem [shape: f32[1,256], index: 3, kind: input, shape index: {}]
  %s4 = inlined_call_operand.hbm [shape: bf16[256,256], index: 4, kind: input, shape index: {}]
  %s5 = inlined_call_operand.vmem [shape: f32[1,256], index: 5, kind: input, shape index: {}]
  %s6 = inlined_call_operand.vmem [shape: f32[1,256], index: 6, kind: input, shape index: {}]
  %s7 = inlined_call_operand.<no memory space> [shape: f32[1,1], index: 7, kind: input, shape index: {}]
  %s8 = inlined_call_operand.hbm [shape: f32[1,8], index: 8, kind: output, shape index: {}]
  %s9 = sld [smem:[#allocation0]]
  $region58: #{tpu_custom_call.1} parent=0
    _
  %s11 = ssub.s32 1, %s9
  %s12 = scalar_select 0, %s11, %s9
  %13 = sst [smem:[#allocation2]] %s7
  $region1: #{tpu_custom_call.1} parent=0
    #allocation3 [shape = 'u8[4096]{0}', space=vmem, size = 0x1000, scoped, tag = 'input window, operand 0, single buffered']
    #allocation4 [shape = 's32[1]{0}', space=sflag, size = 0x4, scoped, tag = 'scoped memory for tpu_custom_call.1']
    #allocation5 [shape = 's32[1]{0}', space=sflag, size = 0x4, scoped, tag = 'scoped memory for tpu_custom_call.1']
    #allocation6 [shape = 'u8[4096]{0}', space=vmem, size = 0x1000, scoped, tag = 'input window, operand 1, single buffered']
    #allocation7 [shape = 's32[1]{0}', space=sflag, size = 0x4, scoped, tag = 'scoped memory for tpu_custom_call.1']
    #allocation8 [shape = 'u8[16384]{0}', space=vmem, size = 0x4000, scoped, tag = 'input window, operand 2, single buffered']
    #allocation9 [shape = 'u8[131072]{0}', space=vmem, size = 0x20000, scoped, tag = 'input window, operand 4, single buffered']
    #allocation10 [shape = 's32[1]{0}', space=sflag, size = 0x4, scoped, tag = 'scoped memory for tpu_custom_call.1']
    #allocation11 [shape = 'u8[512]{0}', space=vmem, size = 0x400, scoped, tag = 'output window, operand 0, single buffered']
    %14 = vsyncpa [#allocation4], 0
    %15 = vsyncpa [#allocation7], 0
    %16 = vsyncpa [#allocation10], 0
    %17 = vsyncpa [#allocation5], 0
    // Predicated region
    $region2: #{tpu_custom_call.1} parent=1 // pred_check
      _
    $region3: #{tpu_custom_call.1} parent=1 // pred_check_branch
      %19 = sbr.rel (0) target = $region5
    $region4: #{tpu_custom_call.1} parent=1 // pred_region
      %21 = vsyncadd [#allocation4], 0
      %s23 = sshll.u32 %s0, 4
      %s24 = int_to_ptr.hbm [resolvable:$true] %s23
      %s25 = sshll.u32 [#allocation3], 4
      %s26 = int_to_ptr.vmem [resolvable:$true] %s25
      %28 = dma.hbm_to_vmem [thread:$0]  %s24, 128, %s26, [#allocation4]
    $region5: #{tpu_custom_call.1} parent=1 // pred_fallthru
      _
    // Predicated region
    $region6: #{tpu_custom_call.1} parent=1 // pred_check
      _
    $region7: #{tpu_custom_call.1} parent=1 // pred_check_branch
      %30 = sbr.rel (0) target = $region9
    $region8: #{tpu_custom_call.1} parent=1 // pred_region
      %32 = vsyncadd [#allocation7], 0
      %s34 = sshll.u32 %s1, 4
      %s35 = int_to_ptr.hbm [resolvable:$true] %s34
      %s36 = sshll.u32 [#allocation6], 4
      %s37 = int_to_ptr.vmem [resolvable:$true] %s36
      %39 = dma.hbm_to_vmem [thread:$0]  %s35, 128, %s37, [#allocation7]
    $region9: #{tpu_custom_call.1} parent=1 // pred_fallthru
      _
    // Predicated region
    $region10: #{tpu_custom_call.1} parent=1 // pred_check
      _
    $region11: #{tpu_custom_call.1} parent=1 // pred_check_branch
      %41 = sbr.rel (0) target = $region13
    $region12: #{tpu_custom_call.1} parent=1 // pred_region
      %43 = vsyncadd [#allocation7], 0
      %s44 = sshll.u32 %s2, 4
      %s45 = int_to_ptr.hbm [resolvable:$true] %s44
      %s46 = sshll.u32 [#allocation8], 4
      %s47 = int_to_ptr.vmem [resolvable:$true] %s46
      %52 = dma.hbm_to_vmem [thread:$0]  %s45, 512, %s47, [#allocation7], 128, 128, 8
    $region13: #{tpu_custom_call.1} parent=1 // pred_fallthru
      _
    // Predicated region
    $region14: #{tpu_custom_call.1} parent=1 // pred_check
      _
    $region15: #{tpu_custom_call.1} parent=1 // pred_check_branch
      %54 = sbr.rel (0) target = $region17
    $region16: #{tpu_custom_call.1} parent=1 // pred_region
      _
    $region17: #{tpu_custom_call.1} parent=1 // pred_fallthru
      _
    // Predicated region
    $region18: #{tpu_custom_call.1} parent=1 // pred_check
      _
    $region19: #{tpu_custom_call.1} parent=1 // pred_check_branch
      %56 = sbr.rel (0) target = $region21
    $region20: #{tpu_custom_call.1} parent=1 // pred_region
      %58 = vsyncadd [#allocation10], 0
      %s59 = sshll.u32 %s4, 4
      %s60 = int_to_ptr.hbm [resolvable:$true] %s59
      %s61 = sshll.u32 [#allocation9], 4
      %s62 = int_to_ptr.vmem [resolvable:$true] %s61
      %67 = dma.hbm_to_vmem [thread:$0]  %s60, 4096, %s62, [#allocation10], 128, 128, 8
    $region21: #{tpu_custom_call.1} parent=1 // pred_fallthru
      _
    // Predicated region
    $region22: #{tpu_custom_call.1} parent=1 // pred_check
      _
    $region23: #{tpu_custom_call.1} parent=1 // pred_check_branch
      %69 = sbr.rel (0) target = $region25
    $region24: #{tpu_custom_call.1} parent=1 // pred_region
      _
    $region25: #{tpu_custom_call.1} parent=1 // pred_fallthru
      _
    // Predicated region
    $region26: #{tpu_custom_call.1} parent=1 // pred_check
      _
    $region27: #{tpu_custom_call.1} parent=1 // pred_check_branch
      %71 = sbr.rel (0) target = $region29
    $region28: #{tpu_custom_call.1} parent=1 // pred_region
      _
    $region29: #{tpu_custom_call.1} parent=1 // pred_fallthru
      _
    // Predicated region
    $region30: #{tpu_custom_call.1} parent=1 // pred_check
      _
    $region31: #{tpu_custom_call.1} parent=1 // pred_check_branch
      %73 = sbr.rel (0) target = $region33
    $region32: #{tpu_custom_call.1} parent=1 // pred_region
      _
    $region33: #{tpu_custom_call.1} parent=1 // pred_fallthru
      _
    // Predicated region
    $region34: #{tpu_custom_call.1} parent=1 // pred_check
      _
    $region35: #{tpu_custom_call.1} parent=1 // pred_check_branch
      %75 = sbr.rel (0) target = $region37
    $region36: #{tpu_custom_call.1} parent=1 // pred_region
      %77 = dma.done [#allocation4], 128
    $region37: #{tpu_custom_call.1} parent=1 // pred_fallthru
      _
    // Predicated region
    $region38: #{tpu_custom_call.1} parent=1 // pred_check
      _
    $region39: #{tpu_custom_call.1} parent=1 // pred_check_branch
      %79 = sbr.rel (0) target = $region41
    $region40: #{tpu_custom_call.1} parent=1 // pred_region
      %81 = dma.done [#allocation7], 128
    $region41: #{tpu_custom_call.1} parent=1 // pred_fallthru
      _
    // Predicated region
    $region42: #{tpu_custom_call.1} parent=1 // pred_check
      _
    $region43: #{tpu_custom_call.1} parent=1 // pred_check_branch
      %83 = sbr.rel (0) target = $region45
    $region44: #{tpu_custom_call.1} parent=1 // pred_region
      %85 = dma.done [#allocation7], 512
    $region45: #{tpu_custom_call.1} parent=1 // pred_fallthru
      _
    // Predicated region
    $region46: #{tpu_custom_call.1} parent=1 // pred_check
      _
    $region47: #{tpu_custom_call.1} parent=1 // pred_check_branch
      %87 = sbr.rel (0) target = $region49
    $region48: #{tpu_custom_call.1} parent=1 // pred_region
      %89 = dma.done [#allocation10], 4096
    $region49: #{tpu_custom_call.1} parent=1 // pred_fallthru
      _
    %v91 = vld [vmem:[#allocation3] sm:$0xff]
    %v92 = vld [vmem:[#allocation6] sm:$0xff]
    %94 = vrot.lane.b32.xlu0 %v92, 16
    %v95 = vpop.permute.xlu0 %94
    %vm97 = vcmask 130048
    %v98 = vsel %vm97, %v91, %v95
    %vm99 = vcmask 195584
    %v100 = vsel %vm99, %v98, 0.0
    %v101 = vpack.c.bf16 %v100, %v100
    %v102 = vld [vmem:[#allocation8] sm:$0xff]
    %v103 = vld [vmem:[#allocation8 + $0x8] sm:$0xff]
    %v104 = vld [vmem:[#allocation8 + $0x10] sm:$0xff]
    %v105 = vld [vmem:[#allocation8 + $0x18] sm:$0xff]
    %v106 = vld [vmem:[%s3] sm:$0x3]
    %v108 = vperm.slane %v106, 0
    %v109 = vperm.slane %v106, 1
    %v116 = vunpack.c.l.b16 %v102
    %v117 = vunpack.c.h.b16 %v102
    %v118 = vunpack.c.l.b16 %v103
    %v119 = vunpack.c.h.b16 %v103
    %v120 = vunpack.c.l.b16 %v104
    %v121 = vunpack.c.h.b16 %v104
    %v122 = vunpack.c.l.b16 %v105
    %v123 = vunpack.c.h.b16 %v105
    %v124 = vpack.c.b16 %v118, %v116
    %v125 = vpack.c.b16 %v119, %v117
    %v126 = vpack.c.b16 %v122, %v120
    %v127 = vpack.c.b16 %v123, %v121
    %vm132 = vcmask 261120
    %v134 = vsel %vm132, %v101, 0
    %136 = vmatpush.bf16.msra.mxu0 0
    %137 = vmatpush.bf16.msra.mxu0 0
    %138 = vmatpush.bf16.msra.mxu0 0
    %139 = vmatpush.bf16.msra.mxu0 0
    %140 = vmatpush.bf16.msra.mxu0 0
    %141 = vmatpush.bf16.msra.mxu0 0
    %142 = vmatpush.bf16.msra.mxu0 %v126
    %143 = vmatpush.bf16.msra.mxu0 %v124
    %144 = vmatmul.bf16.gmra.mxu0 %v134
    %v145 = vpop.f32.mrf.mxu0
    %v146 = vadd.f32 %v108, %v145
    %v147 = vpop.f32.mrf.mxu0
    %148 = vdwg.mxu0
    %149 = vmatpush.bf16.msra.mxu0 0
    %150 = vmatpush.bf16.msra.mxu0 0
    %151 = vmatpush.bf16.msra.mxu0 0
    %152 = vmatpush.bf16.msra.mxu0 0
    %153 = vmatpush.bf16.msra.mxu0 0
    %154 = vmatpush.bf16.msra.mxu0 0
    %155 = vmatpush.bf16.msra.mxu0 %v127
    %156 = vmatpush.bf16.msra.mxu0 %v125
    %157 = vmatmul.bf16.gmra.mxu0 %v134
    %v158 = vpop.f32.mrf.mxu0
    %v159 = vadd.f32 %v109, %v158
    %v160 = vpop.f32.mrf.mxu0
    %161 = vdwg.mxu0
    %v162 = vmax.f32 %v146, 0.0
    %v163 = vmax.f32 %v159, 0.0
    %v164 = vpack.c.bf16 %v162, %v162
    %v165 = vpack.c.bf16 %v163, %v163
    %v166 = vld [vmem:[#allocation9] sm:$0xff]
    %v167 = vld [vmem:[#allocation9 + $0x8] sm:$0xff]
    %v168 = vld [vmem:[#allocation9 + $0x10] sm:$0xff]
    %v169 = vld [vmem:[#allocation9 + $0x18] sm:$0xff]
    %v170 = vld [vmem:[#allocation9 + $0x20] sm:$0xff]
    %v171 = vld [vmem:[#allocation9 + $0x28] sm:$0xff]
    %v172 = vld [vmem:[#allocation9 + $0x30] sm:$0xff]
    %v173 = vld [vmem:[#allocation9 + $0x38] sm:$0xff]
    %v174 = vld [vmem:[#allocation9 + $0x40] sm:$0xff]
    %v175 = vld [vmem:[#allocation9 + $0x48] sm:$0xff]
    %v176 = vld [vmem:[#allocation9 + $0x50] sm:$0xff]
    %v177 = vld [vmem:[#allocation9 + $0x58] sm:$0xff]
    %v178 = vld [vmem:[#allocation9 + $0x60] sm:$0xff]
    %v179 = vld [vmem:[#allocation9 + $0x68] sm:$0xff]
    %v180 = vld [vmem:[#allocation9 + $0x70] sm:$0xff]
    %v181 = vld [vmem:[#allocation9 + $0x78] sm:$0xff]
    %v182 = vld [vmem:[#allocation9 + $0x80] sm:$0xff]
    %v183 = vld [vmem:[#allocation9 + $0x88] sm:$0xff]
    %v184 = vld [vmem:[#allocation9 + $0x90] sm:$0xff]
    %v185 = vld [vmem:[#allocation9 + $0x98] sm:$0xff]
    %v186 = vld [vmem:[#allocation9 + $0xa0] sm:$0xff]
    %v187 = vld [vmem:[#allocation9 + $0xa8] sm:$0xff]
    %v188 = vld [vmem:[#allocation9 + $0xb0] sm:$0xff]
    %v189 = vld [vmem:[#allocation9 + $0xb8] sm:$0xff]
    %v190 = vld [vmem:[#allocation9 + $0xc0] sm:$0xff]
    %v191 = vld [vmem:[#allocation9 + $0xc8] sm:$0xff]
    %v192 = vld [vmem:[#allocation9 + $0xd0] sm:$0xff]
    %v193 = vld [vmem:[#allocation9 + $0xd8] sm:$0xff]
    %v194 = vld [vmem:[#allocation9 + $0xe0] sm:$0xff]
    %v195 = vld [vmem:[#allocation9 + $0xe8] sm:$0xff]
    %v196 = vld [vmem:[#allocation9 + $0xf0] sm:$0xff]
    %v197 = vld [vmem:[#allocation9 + $0xf8] sm:$0xff]
    %v198 = vld [vmem:[%s5] sm:$0x3]
    %v200 = vperm.slane %v198, 0
    %v201 = vperm.slane %v198, 1
    %v236 = vunpack.c.l.b16 %v166
    %v237 = vunpack.c.h.b16 %v166
    %v238 = vunpack.c.l.b16 %v167
    %v239 = vunpack.c.h.b16 %v167
    %v240 = vunpack.c.l.b16 %v168
    %v241 = vunpack.c.h.b16 %v168
    %v242 = vunpack.c.l.b16 %v169
    %v243 = vunpack.c.h.b16 %v169
    %v244 = vunpack.c.l.b16 %v170
    %v245 = vunpack.c.h.b16 %v170
    %v246 = vunpack.c.l.b16 %v171
    %v247 = vunpack.c.h.b16 %v171
    %v248 = vunpack.c.l.b16 %v172
    %v249 = vunpack.c.h.b16 %v172
    %v250 = vunpack.c.l.b16 %v173
    %v251 = vunpack.c.h.b16 %v173
    %v252 = vunpack.c.l.b16 %v174
    %v253 = vunpack.c.h.b16 %v174
    %v254 = vunpack.c.l.b16 %v175
    %v255 = vunpack.c.h.b16 %v175
    %v256 = vunpack.c.l.b16 %v176
    %v257 = vunpack.c.h.b16 %v176
    %v258 = vunpack.c.l.b16 %v177
    %v259 = vunpack.c.h.b16 %v177
    %v260 = vunpack.c.l.b16 %v178
    %v261 = vunpack.c.h.b16 %v178
    %v262 = vunpack.c.l.b16 %v179
    %v263 = vunpack.c.h.b16 %v179
    %v264 = vunpack.c.l.b16 %v180
    %v265 = vunpack.c.h.b16 %v180
    %v266 = vunpack.c.l.b16 %v181
    %v267 = vunpack.c.h.b16 %v181
    %v268 = vunpack.c.l.b16 %v182
    %v269 = vunpack.c.h.b16 %v182
    %v270 = vunpack.c.l.b16 %v183
    %v271 = vunpack.c.h.b16 %v183
    %v272 = vunpack.c.l.b16 %v184
    %v273 = vunpack.c.h.b16 %v184
    %v274 = vunpack.c.l.b16 %v185
    %v275 = vunpack.c.h.b16 %v185
    %v276 = vunpack.c.l.b16 %v186
    %v277 = vunpack.c.h.b16 %v186
    %v278 = vunpack.c.l.b16 %v187
    %v279 = vunpack.c.h.b16 %v187
    %v280 = vunpack.c.l.b16 %v188
    %v281 = vunpack.c.h.b16 %v188
    %v282 = vunpack.c.l.b16 %v189
    %v283 = vunpack.c.h.b16 %v189
    %v284 = vunpack.c.l.b16 %v190
    %v285 = vunpack.c.h.b16 %v190
    %v286 = vunpack.c.l.b16 %v191
    %v287 = vunpack.c.h.b16 %v191
    %v288 = vunpack.c.l.b16 %v192
    %v289 = vunpack.c.h.b16 %v192
    %v290 = vunpack.c.l.b16 %v193
    %v291 = vunpack.c.h.b16 %v193
    %v292 = vunpack.c.l.b16 %v194
    %v293 = vunpack.c.h.b16 %v194
    %v294 = vunpack.c.l.b16 %v195
    %v295 = vunpack.c.h.b16 %v195
    %v296 = vunpack.c.l.b16 %v196
    %v297 = vunpack.c.h.b16 %v196
    %v298 = vunpack.c.l.b16 %v197
    %v299 = vunpack.c.h.b16 %v197
    %v300 = vpack.c.b16 %v238, %v236
    %v301 = vpack.c.b16 %v239, %v237
    %v302 = vpack.c.b16 %v242, %v240
    %v303 = vpack.c.b16 %v243, %v241
    %v304 = vpack.c.b16 %v246, %v244
    %v305 = vpack.c.b16 %v247, %v245
    %v306 = vpack.c.b16 %v250, %v248
    %v307 = vpack.c.b16 %v251, %v249
    %v308 = vpack.c.b16 %v254, %v252
    %v309 = vpack.c.b16 %v255, %v253
    %v310 = vpack.c.b16 %v258, %v256
    %v311 = vpack.c.b16 %v259, %v257
    %v312 = vpack.c.b16 %v262, %v260
    %v313 = vpack.c.b16 %v263, %v261
    %v314 = vpack.c.b16 %v266, %v264
    %v315 = vpack.c.b16 %v267, %v265
    %v316 = vpack.c.b16 %v270, %v268
    %v317 = vpack.c.b16 %v271, %v269
    %v318 = vpack.c.b16 %v274, %v272
    %v319 = vpack.c.b16 %v275, %v273
    %v320 = vpack.c.b16 %v278, %v276
    %v321 = vpack.c.b16 %v279, %v277
    %v322 = vpack.c.b16 %v282, %v280
    %v323 = vpack.c.b16 %v283, %v281
    %v324 = vpack.c.b16 %v286, %v284
    %v325 = vpack.c.b16 %v287, %v285
    %v326 = vpack.c.b16 %v290, %v288
    %v327 = vpack.c.b16 %v291, %v289
    %v328 = vpack.c.b16 %v294, %v292
    %v329 = vpack.c.b16 %v295, %v293
    %v330 = vpack.c.b16 %v298, %v296
    %v331 = vpack.c.b16 %v299, %v297
    %364 = vmatpush.bf16.msra.mxu0 %v314
    %365 = vmatpush.bf16.msra.mxu0 %v312
    %366 = vmatpush.bf16.msra.mxu0 %v310
    %367 = vmatpush.bf16.msra.mxu0 %v308
    %368 = vmatpush.bf16.msra.mxu0 %v306
    %369 = vmatpush.bf16.msra.mxu0 %v304
    %370 = vmatpush.bf16.msra.mxu0 %v302
    %371 = vmatpush.bf16.msra.mxu0 %v300
    %372 = vmatmul.bf16.gmra.mxu0 %v164
    %v373 = vpop.f32.mrf.mxu0
    %v374 = vadd.f32 %v200, %v373
    %v375 = vpop.f32.mrf.mxu0
    %376 = vdwg.mxu0
    %377 = vmatpush.bf16.msra.mxu0 %v330
    %378 = vmatpush.bf16.msra.mxu0 %v328
    %379 = vmatpush.bf16.msra.mxu0 %v326
    %380 = vmatpush.bf16.msra.mxu0 %v324
    %381 = vmatpush.bf16.msra.mxu0 %v322
    %382 = vmatpush.bf16.msra.mxu0 %v320
    %383 = vmatpush.bf16.msra.mxu0 %v318
    %384 = vmatpush.bf16.msra.mxu0 %v316
    %385 = vmatmul.bf16.gmra.mxu0 %v165
    %v386 = vpop.f32.mrf.mxu0
    %v387 = vadd.f32 %v374, %v386
    %v388 = vpop.f32.mrf.mxu0
    %389 = vdwg.mxu0
    %390 = vmatpush.bf16.msra.mxu0 %v315
    %391 = vmatpush.bf16.msra.mxu0 %v313
    %392 = vmatpush.bf16.msra.mxu0 %v311
    %393 = vmatpush.bf16.msra.mxu0 %v309
    %394 = vmatpush.bf16.msra.mxu0 %v307
    %395 = vmatpush.bf16.msra.mxu0 %v305
    %396 = vmatpush.bf16.msra.mxu0 %v303
    %397 = vmatpush.bf16.msra.mxu0 %v301
    %398 = vmatmul.bf16.gmra.mxu0 %v164
    %v399 = vpop.f32.mrf.mxu0
    %v400 = vadd.f32 %v201, %v399
    %v401 = vpop.f32.mrf.mxu0
    %402 = vdwg.mxu0
    %403 = vmatpush.bf16.msra.mxu0 %v331
    %404 = vmatpush.bf16.msra.mxu0 %v329
    %405 = vmatpush.bf16.msra.mxu0 %v327
    %406 = vmatpush.bf16.msra.mxu0 %v325
    %407 = vmatpush.bf16.msra.mxu0 %v323
    %408 = vmatpush.bf16.msra.mxu0 %v321
    %409 = vmatpush.bf16.msra.mxu0 %v319
    %410 = vmatpush.bf16.msra.mxu0 %v317
    %411 = vmatmul.bf16.gmra.mxu0 %v165
    %v412 = vpop.f32.mrf.mxu0
    %v413 = vadd.f32 %v400, %v412
    %v414 = vpop.f32.mrf.mxu0
    %415 = vdwg.mxu0
    %v416 = vmax.f32 %v387, 0.0
    %v417 = vmax.f32 %v413, 0.0
    %v418 = vld [vmem:[%s6] sm:$0x3]
    %v420 = vperm.slane %v418, 0
    %v421 = vperm.slane %v418, 1
    %v424 = vmul.f32 %v416, %v420
    %v425 = vmul.f32 %v417, %v421
    %v426 = vadd.f32 %v424, %v425
    %427 = vadd.xlane.f32.xlu0 %v426
    %v428 = vpop.xlane.xlu0 %427
    %s429 = sld [smem:[#allocation2]]
    %v430 = vstv %s429
    %v431 = vadd.f32 %v428, %v430
    %v433 = vlaneseq
    %v434 = vand.u32 %v433, 127
    %v435 = vperm.slane %v431, %v434
    %vm437 = vcmask 57344
    %438 = vst.msk [vmem:[#allocation11] sm:$0x1] %vm437, %v435
    // Predicated region
    $region50: #{tpu_custom_call.1} parent=1 // pred_check
      _
    $region51: #{tpu_custom_call.1} parent=1 // pred_check_branch
      %440 = sbr.rel (0) target = $region53
    $region52: #{tpu_custom_call.1} parent=1 // pred_region
      %442 = vsyncadd [#allocation5], 0
      %s444 = sshll.u32 [#allocation11], 4
      %s445 = int_to_ptr.vmem [resolvable:$true] %s444
      %s446 = sshll.u32 %s8, 4
      %s447 = int_to_ptr.hbm [resolvable:$true] %s446
      %449 = dma.vmem_to_hbm [thread:$0]  %s445, 16, %s447, [#allocation5]
    $region53: #{tpu_custom_call.1} parent=1 // pred_fallthru
      _
    // Predicated region
    $region54: #{tpu_custom_call.1} parent=1 // pred_check
      _
    $region55: #{tpu_custom_call.1} parent=1 // pred_check_branch
      %451 = sbr.rel (0) target = $region57
    $region56: #{tpu_custom_call.1} parent=1 // pred_region
      %453 = dma.done [#allocation5], 16
    $region57: #{tpu_custom_call.1} parent=1 // pred_fallthru
      _
    %454 = vsyncpa [#allocation4], 1
    %455 = vsyncpa [#allocation7], 1
    %456 = vsyncpa [#allocation10], 1
    %457 = vsyncpa [#allocation5], 1

</llo_original>
